<compile_context>
chip_gen: v6e
topology: v6e:2x2x1
jax: 0.10.0
libtpu: 0.0.40
codegen_flags: <defaults>
</compile_context>

<pallas_src>
import numpy as np
import jax
import jax.numpy as jnp
from jax.experimental import pallas as pl
from jax.experimental.pallas import tpu as pltpu

_SQRT1_2 = 0.7071067811865476


def _round_up(x, m):
    return ((x + m - 1) // m) * m


def _erf_f32(x):
    # Abramowitz & Stegun 7.1.26 rational approximation (|abs err| < 1.5e-7), built from
    # Mosaic-supported elementwise ops.  The divide is an EUP approx reciprocal plus one
    # Newton refinement (error ~eps^2), keeping the VALU free for the polynomial.
    a1 = 0.254829592
    a2 = -0.284496736
    a3 = 1.421413741
    a4 = -1.453152027
    a5 = 1.061405429
    p = 0.3275911
    sign = jnp.where(x >= 0.0, 1.0, -1.0)
    ax = jnp.abs(x)
    d = 1.0 + p * ax
    t0 = pl.reciprocal(d, approx=True)     # EUP slot
    t = t0 * (2.0 - d * t0)                # one Newton step -> ~f32-accurate 1/d
    poly = ((((a5 * t + a4) * t + a3) * t + a2) * t + a1) * t
    return sign * (1.0 - poly * jnp.exp(-ax * ax))


def _mv_forward_kernel(w2_ref, b2_ref, zT_ref, pd_ref):
    # w2: (2R, 2Z) block-diagonal folded weights (1/sqrt(2) of Phi already folded in)
    # b2: (2R, 1)  folded bias, stacked twice
    # zT: (Z, blk) economic indicators, time on lanes
    # pd: (R, blk) output tile, time on lanes
    blk = zT_ref.shape[1]
    h = blk // 2
    z_dim = zT_ref.shape[0]
    r_dim = pd_ref.shape[0]

    w2 = w2_ref[...]

    # Stack the two lane-halves of the tile onto sublanes: rows [0,R) of x correspond to
    # lanes [0,h) and rows [R,2R) to lanes [h,blk).  The block-diagonal w2 routes each
    # z-row to the right half, so x is (2R, h) and the erf epilogue below runs on fully
    # filled 8-sublane vregs.  Contraction stays on the VPU (K=Z is tiny; MXU would be
    # pure push/pop latency).  Upcast after load so a bf16 zT input is accepted.
    x = b2_ref[...] + w2[:, 0:1] * zT_ref[0:1, 0:h].astype(jnp.float32)
    for zi in range(1, z_dim):
        x = x + w2[:, zi:zi + 1] * zT_ref[zi:zi + 1, 0:h].astype(jnp.float32)
    for zi in range(z_dim):
        x = x + w2[:, z_dim + zi:z_dim + zi + 1] * zT_ref[zi:zi + 1, h:blk].astype(jnp.float32)

    # Phi folded: pd = 0.5*erf(x) + 0.5 + 1e-9 (same op order as the f32 reference).
    pd = 0.5 * _erf_f32(x) + 0.5 + 1e-9

    # Un-stack the sublane-packed halves back onto lanes (unmasked, 128-aligned stores).
    pd_ref[:, 0:h] = pd[0:r_dim, :]
    pd_ref[:, h:blk] = pd[r_dim:2 * r_dim, :]


def merton_vasicek_forward_td(odf_ttc, zT, I, w_alpha, w_rho, *, block_t=2048):
    """Lane-dense entry point (no transposes): zT is (Z, T); returns pd as (R, T).

    odf_ttc: (R,), zT: (Z, T) [f32 or bf16], I: (Z, R), w_alpha: (1, Z), w_rho: (1, R).
    """
    if zT.dtype != jnp.bfloat16:
        zT = zT.astype(jnp.float32)
    I = I.astype(jnp.float32)
    w_alpha = w_alpha.astype(jnp.float32)
    w_rho = w_rho.astype(jnp.float32)
    Z, T = zT.shape
    R = I.shape[1]

    # ---- Hoisted parameter math (tiny (1,Z)/(1,R) tensors, runs once in plain JAX) ----
    alpha = jnp.sqrt(jax.nn.softmax(w_alpha, axis=1))            # (1, Z)
    rho = jax.nn.sigmoid(w_rho)                                  # (1, R)
    inv_sqrt_1mrho = jax.lax.rsqrt(1.0 - rho)                    # (1, R)
    scale = jnp.sqrt(rho) * inv_sqrt_1mrho                       # sqrt(rho/(1-rho)), (1, R)
    # Fold Phi's 1/sqrt(2) into the affine map so the kernel only needs erf().
    wT = (alpha.reshape(Z, 1) * I * scale).T * _SQRT1_2          # (R, Z)
    # TODO(synk): ndtri (inverse normal CDF) has no Pallas primitive; computed here in
    # plain JAX on the tiny (R,) vector and folded into the bias.
    bias = (jax.scipy.special.ndtri(odf_ttc.astype(jnp.float32)).reshape(1, R)
            * inv_sqrt_1mrho).reshape(R, 1) * _SQRT1_2           # (R, 1)

    # Block-diagonal weights / stacked bias for the in-kernel sublane packing:
    # rows [0,R) consume z-rows [0,Z) (first lane-half), rows [R,2R) consume z-rows
    # [Z,2Z) (second lane-half).
    w2 = jnp.zeros((2 * R, 2 * Z), jnp.float32).at[:R, :Z].set(wT).at[R:, Z:].set(wT)
    b2 = jnp.concatenate([bias, bias], axis=0)                   # (2R, 1)

    # ---- Tiling: T on lanes, padded only to a multiple of 256 (half-tiles stay 128-
    # aligned); block lane width defaults to 2048 and the grid uses cdiv.  Working set is
    # KB-scale on every generation (incl. v7x's 64 MiB VMEM), so big blocks are free.
    T_pad = _round_up(T, 256)
    if T_pad != T:
        zT = jnp.zeros((Z, T_pad), zT.dtype).at[:, :T].set(zT)
    blk = max(256, min(_round_up(int(block_t), 256), T_pad))
    grid = (pl.cdiv(T_pad, blk),)

    pdT = pl.pallas_call(
        _mv_forward_kernel,
        out_shape=jax.ShapeDtypeStruct((R, T_pad), jnp.float32),
        grid=grid,
        in_specs=[
            pl.BlockSpec((2 * R, 2 * Z), lambda i: (0, 0)),      # folded weights (resident)
            pl.BlockSpec((2 * R, 1), lambda i: (0, 0)),          # folded bias (resident)
            pl.BlockSpec((Z, blk), lambda i: (0, i)),            # zT tile, lane-dense
        ],
        out_specs=pl.BlockSpec((R, blk), lambda i: (0, i)),      # pd tile, lane-dense
        compiler_params=pltpu.CompilerParams(dimension_semantics=("parallel",)),
    )(w2, b2, zT)

    return pdT if T_pad == T else pdT[:, :T]


def merton_vasicek_forward(odf_ttc, z, I, w_alpha, w_rho, *, block_t=2048):
    """Torch-layout compatibility API: z is (T, Z); returns pd as (T, R).

    Adds two layout transposes around the lane-dense core; callers that control their
    layouts should use merton_vasicek_forward_td directly (saves ~3x HBM traffic and two
    XLA dispatches)."""
    pdT = merton_vasicek_forward_td(odf_ttc, jnp.asarray(z).T, I, w_alpha, w_rho,
                                    block_t=block_t)
    return pdT.T


def init_params(rho_dim, z_dim, rho0):
    """Deterministic parameter init matching MertonVasicek.__init__ (f32 instead of f64)."""
    w_alpha = jnp.ones((1, z_dim), jnp.float32)
    w_rho = jnp.ones((1, rho_dim), jnp.float32) * jnp.float32(-np.log(1.0 / rho0 - 1.0))
    return w_alpha, w_rho


def reference_forward(odf_ttc, z, I, w_alpha, w_rho):
    # Pure-JAX reference mirroring the torch forward exactly (f32), z: (T, Z) -> (T, R).
    alpha = jnp.sqrt(jax.nn.softmax(w_alpha, axis=1))
    rho = 1.0 / (1.0 + jnp.exp(-w_rho))
    icdf = jax.scipy.special.ndtri(odf_ttc)
    x = (icdf + (z * alpha) @ I * jnp.sqrt(rho)) / jnp.sqrt(1.0 - rho)
    return jax.scipy.stats.norm.cdf(x) + 1e-9


if __name__ == "__main__":
    T, Z, R = 640, 4, 4         # time steps, z_dim (indicators), rho_dim (ratings)
    rho0 = 0.1

    key = jax.random.PRNGKey(0)
    k1, k2 = jax.random.split(key)
    # Lane-dense (time-major-on-lanes) indicators: (Z, T) -- no transpose feeds the kernel.
    zT = jax.random.normal(k1, (Z, T), dtype=jnp.float32)
    odf_ttc = jax.random.uniform(k2, (R,), jnp.float32, minval=0.02, maxval=0.2)  # TTC PDs in (0,1)

    # Sign indicator matrix I (z_dim, rho_dim): deterministic +/-1 checkerboard.
    idx = np.indices((Z, R)).sum(axis=0)
    I = jnp.asarray(np.where(idx % 2 == 0, 1.0, -1.0), dtype=jnp.float32)

    w_alpha, w_rho = init_params(R, Z, rho0)

    # Lane-dense path (preferred): (Z, T) in -> (R, T) out, no wrapper transposes.
    pdT = merton_vasicek_forward_td(odf_ttc, zT, I, w_alpha, w_rho)
    pdT = jax.block_until_ready(pdT)

    ref = reference_forward(odf_ttc, zT.T, I, w_alpha, w_rho)   # torch semantics, (T, R)
    ref = jax.block_until_ready(ref)

    assert pdT.shape == (R, T), pdT.shape
    assert bool(np.all(np.isfinite(np.asarray(pdT))))
    assert np.allclose(np.asarray(pdT).T, np.asarray(ref), rtol=1e-3, atol=2e-5), (
        np.max(np.abs(np.asarray(pdT).T - np.asarray(ref)))
    )

    # Torch-layout compatibility path: (T, Z) in -> (T, R) out.
    pd = merton_vasicek_forward(odf_ttc, zT.T, I, w_alpha, w_rho)
    pd = jax.block_until_ready(pd)
    assert pd.shape == (T, R), pd.shape
    assert np.allclose(np.asarray(pd), np.asarray(ref), rtol=1e-3, atol=2e-5), (
        np.max(np.abs(np.asarray(pd) - np.asarray(ref)))
    )

    print("KERNEL_OK")
</pallas_src>

<mosaic_0001>
module attributes {stable_mosaic.version = 11 : i64} {
  func.func @_mv_forward_kernel(%arg0: i32, %arg1: memref<8x8xf32, #tpu.memory_space<vmem>>, %arg2: memref<8x1xf32, #tpu.memory_space<vmem>>, %arg3: memref<4x768xf32, #tpu.memory_space<vmem>>, %arg4: memref<4x768xf32, #tpu.memory_space<vmem>>) attributes {dimension_semantics = [#tpu.dimension_semantics<parallel>], iteration_bounds = array<i64: 1>, scalar_prefetch = 0 : i64, scratch_operands = 0 : i64, tpu.core_type = #tpu.core_type<tc>, window_params = [{pipeline_mode = #tpu.pipeline_mode<synchronous>, transform_indices = @transform_0, window_bounds = array<i64: 8, 8>}, {pipeline_mode = #tpu.pipeline_mode<synchronous>, transform_indices = @transform_1, window_bounds = array<i64: 8, 1>}, {transform_indices = @transform_2, window_bounds = array<i64: 4, 768>}, {transform_indices = @transform_3, window_bounds = array<i64: 4, 768>}]} {
    %c0 = arith.constant 0 : index
    %c0_0 = arith.constant 0 : index
    %0 = vector.load %arg1[%c0, %c0_0] : memref<8x8xf32, #tpu.memory_space<vmem>>, vector<8x8xf32>
    %c0_1 = arith.constant 0 : index
    %c0_2 = arith.constant 0 : index
    %1 = vector.load %arg2[%c0_1, %c0_2] : memref<8x1xf32, #tpu.memory_space<vmem>>, vector<8x1xf32>
    %2 = vector.extract_strided_slice %0 {offsets = [0, 0], sizes = [8, 1], strides = [1, 1]} : vector<8x8xf32> to vector<8x1xf32>
    %c0_3 = arith.constant 0 : index
    %c0_4 = arith.constant 0 : index
    %3 = vector.load %arg3[%c0_3, %c0_4] : memref<4x768xf32, #tpu.memory_space<vmem>>, vector<1x384xf32>
    %4 = vector.broadcast %2 : vector<8x1xf32> to vector<8x384xf32>
    %5 = vector.broadcast %3 : vector<1x384xf32> to vector<8x384xf32>
    %6 = arith.mulf %4, %5 : vector<8x384xf32>
    %7 = vector.broadcast %1 : vector<8x1xf32> to vector<8x384xf32>
    %8 = arith.addf %7, %6 : vector<8x384xf32>
    %9 = vector.extract_strided_slice %0 {offsets = [0, 1], sizes = [8, 1], strides = [1, 1]} : vector<8x8xf32> to vector<8x1xf32>
    %c1 = arith.constant 1 : index
    %c0_5 = arith.constant 0 : index
    %10 = vector.load %arg3[%c1, %c0_5] : memref<4x768xf32, #tpu.memory_space<vmem>>, vector<1x384xf32>
    %11 = vector.broadcast %9 : vector<8x1xf32> to vector<8x384xf32>
    %12 = vector.broadcast %10 : vector<1x384xf32> to vector<8x384xf32>
    %13 = arith.mulf %11, %12 : vector<8x384xf32>
    %14 = arith.addf %8, %13 : vector<8x384xf32>
    %15 = vector.extract_strided_slice %0 {offsets = [0, 2], sizes = [8, 1], strides = [1, 1]} : vector<8x8xf32> to vector<8x1xf32>
    %c2 = arith.constant 2 : index
    %c0_6 = arith.constant 0 : index
    %16 = vector.load %arg3[%c2, %c0_6] : memref<4x768xf32, #tpu.memory_space<vmem>>, vector<1x384xf32>
    %17 = vector.broadcast %15 : vector<8x1xf32> to vector<8x384xf32>
    %18 = vector.broadcast %16 : vector<1x384xf32> to vector<8x384xf32>
    %19 = arith.mulf %17, %18 : vector<8x384xf32>
    %20 = arith.addf %14, %19 : vector<8x384xf32>
    %21 = vector.extract_strided_slice %0 {offsets = [0, 3], sizes = [8, 1], strides = [1, 1]} : vector<8x8xf32> to vector<8x1xf32>
    %c3 = arith.constant 3 : index
    %c0_7 = arith.constant 0 : index
    %22 = vector.load %arg3[%c3, %c0_7] : memref<4x768xf32, #tpu.memory_space<vmem>>, vector<1x384xf32>
    %23 = vector.broadcast %21 : vector<8x1xf32> to vector<8x384xf32>
    %24 = vector.broadcast %22 : vector<1x384xf32> to vector<8x384xf32>
    %25 = arith.mulf %23, %24 : vector<8x384xf32>
    %26 = arith.addf %20, %25 : vector<8x384xf32>
    %27 = vector.extract_strided_slice %0 {offsets = [0, 4], sizes = [8, 1], strides = [1, 1]} : vector<8x8xf32> to vector<8x1xf32>
    %c0_8 = arith.constant 0 : index
    %c384 = arith.constant 384 : index
    %28 = vector.load %arg3[%c0_8, %c384] : memref<4x768xf32, #tpu.memory_space<vmem>>, vector<1x384xf32>
    %29 = vector.broadcast %27 : vector<8x1xf32> to vector<8x384xf32>
    %30 = vector.broadcast %28 : vector<1x384xf32> to vector<8x384xf32>
    %31 = arith.mulf %29, %30 : vector<8x384xf32>
    %32 = arith.addf %26, %31 : vector<8x384xf32>
    %33 = vector.extract_strided_slice %0 {offsets = [0, 5], sizes = [8, 1], strides = [1, 1]} : vector<8x8xf32> to vector<8x1xf32>
    %c1_9 = arith.constant 1 : index
    %c384_10 = arith.constant 384 : index
    %34 = vector.load %arg3[%c1_9, %c384_10] : memref<4x768xf32, #tpu.memory_space<vmem>>, vector<1x384xf32>
    %35 = vector.broadcast %33 : vector<8x1xf32> to vector<8x384xf32>
    %36 = vector.broadcast %34 : vector<1x384xf32> to vector<8x384xf32>
    %37 = arith.mulf %35, %36 : vector<8x384xf32>
    %38 = arith.addf %32, %37 : vector<8x384xf32>
    %39 = vector.extract_strided_slice %0 {offsets = [0, 6], sizes = [8, 1], strides = [1, 1]} : vector<8x8xf32> to vector<8x1xf32>
    %c2_11 = arith.constant 2 : index
    %c384_12 = arith.constant 384 : index
    %40 = vector.load %arg3[%c2_11, %c384_12] : memref<4x768xf32, #tpu.memory_space<vmem>>, vector<1x384xf32>
    %41 = vector.broadcast %39 : vector<8x1xf32> to vector<8x384xf32>
    %42 = vector.broadcast %40 : vector<1x384xf32> to vector<8x384xf32>
    %43 = arith.mulf %41, %42 : vector<8x384xf32>
    %44 = arith.addf %38, %43 : vector<8x384xf32>
    %45 = vector.extract_strided_slice %0 {offsets = [0, 7], sizes = [8, 1], strides = [1, 1]} : vector<8x8xf32> to vector<8x1xf32>
    %c3_13 = arith.constant 3 : index
    %c384_14 = arith.constant 384 : index
    %46 = vector.load %arg3[%c3_13, %c384_14] : memref<4x768xf32, #tpu.memory_space<vmem>>, vector<1x384xf32>
    %47 = vector.broadcast %45 : vector<8x1xf32> to vector<8x384xf32>
    %48 = vector.broadcast %46 : vector<1x384xf32> to vector<8x384xf32>
    %49 = arith.mulf %47, %48 : vector<8x384xf32>
    %50 = arith.addf %44, %49 : vector<8x384xf32>
    %cst = arith.constant 0.000000e+00 : f32
    %51 = vector.broadcast %cst : f32 to vector<8x384xf32>
    %52 = arith.cmpf oge, %50, %51 : vector<8x384xf32>
    %cst_15 = arith.constant 1.000000e+00 : f32
    %cst_16 = arith.constant -1.000000e+00 : f32
    %53 = vector.broadcast %cst_15 : f32 to vector<8x384xf32>
    %54 = vector.broadcast %cst_16 : f32 to vector<8x384xf32>
    %55 = arith.select %52, %53, %54 : vector<8x384xi1>, vector<8x384xf32>
    %56 = math.absf %50 : vector<8x384xf32>
    %cst_17 = arith.constant 0.327591091 : f32
    %57 = vector.broadcast %cst_17 : f32 to vector<8x384xf32>
    %58 = arith.mulf %57, %56 : vector<8x384xf32>
    %cst_18 = arith.constant 1.000000e+00 : f32
    %59 = vector.broadcast %cst_18 : f32 to vector<8x384xf32>
    %60 = arith.addf %59, %58 : vector<8x384xf32>
    %61 = tpu.reciprocal %60 {approx = true} : vector<8x384xf32> -> vector<8x384xf32>
    %62 = arith.mulf %60, %61 : vector<8x384xf32>
    %cst_19 = arith.constant 2.000000e+00 : f32
    %63 = vector.broadcast %cst_19 : f32 to vector<8x384xf32>
    %64 = arith.subf %63, %62 : vector<8x384xf32>
    %65 = arith.mulf %61, %64 : vector<8x384xf32>
    %cst_20 = arith.constant 1.06140542 : f32
    %66 = vector.broadcast %cst_20 : f32 to vector<8x384xf32>
    %67 = arith.mulf %66, %65 : vector<8x384xf32>
    %cst_21 = arith.constant -1.45315206 : f32
    %68 = vector.broadcast %cst_21 : f32 to vector<8x384xf32>
    %69 = arith.addf %67, %68 : vector<8x384xf32>
    %70 = arith.mulf %69, %65 : vector<8x384xf32>
    %cst_22 = arith.constant 1.42141378 : f32
    %71 = vector.broadcast %cst_22 : f32 to vector<8x384xf32>
    %72 = arith.addf %70, %71 : vector<8x384xf32>
    %73 = arith.mulf %72, %65 : vector<8x384xf32>
    %cst_23 = arith.constant -0.284496725 : f32
    %74 = vector.broadcast %cst_23 : f32 to vector<8x384xf32>
    %75 = arith.addf %73, %74 : vector<8x384xf32>
    %76 = arith.mulf %75, %65 : vector<8x384xf32>
    %cst_24 = arith.constant 0.254829586 : f32
    %77 = vector.broadcast %cst_24 : f32 to vector<8x384xf32>
    %78 = arith.addf %76, %77 : vector<8x384xf32>
    %79 = arith.mulf %78, %65 : vector<8x384xf32>
    %cst_25 = arith.constant 0.000000e+00 : f32
    %80 = vector.broadcast %cst_25 : f32 to vector<8x384xf32>
    %81 = arith.subf %80, %56 : vector<8x384xf32>
    %82 = arith.mulf %81, %56 : vector<8x384xf32>
    %83 = math.exp %82 : vector<8x384xf32>
    %84 = arith.mulf %79, %83 : vector<8x384xf32>
    %cst_26 = arith.constant 1.000000e+00 : f32
    %85 = vector.broadcast %cst_26 : f32 to vector<8x384xf32>
    %86 = arith.subf %85, %84 : vector<8x384xf32>
    %87 = arith.mulf %55, %86 : vector<8x384xf32>
    %cst_27 = arith.constant 5.000000e-01 : f32
    %88 = vector.broadcast %cst_27 : f32 to vector<8x384xf32>
    %89 = arith.mulf %88, %87 : vector<8x384xf32>
    %cst_28 = arith.constant 5.000000e-01 : f32
    %90 = vector.broadcast %cst_28 : f32 to vector<8x384xf32>
    %91 = arith.addf %89, %90 : vector<8x384xf32>
    %cst_29 = arith.constant 9.99999971E-10 : f32
    %92 = vector.broadcast %cst_29 : f32 to vector<8x384xf32>
    %93 = arith.addf %91, %92 : vector<8x384xf32>
    %94 = vector.extract_strided_slice %93 {offsets = [0, 0], sizes = [4, 384], strides = [1, 1]} : vector<8x384xf32> to vector<4x384xf32>
    %c0_30 = arith.constant 0 : index
    %c0_31 = arith.constant 0 : index
    %95 = vector.load %arg4[%c0_30, %c0_31] : memref<4x768xf32, #tpu.memory_space<vmem>>, vector<4x384xf32>
    tpu.vector_store %arg4[%c0_30, %c0_31], %94 {strides = array<i32>} : memref<4x768xf32, #tpu.memory_space<vmem>>, vector<4x384xf32>,
    %96 = vector.extract_strided_slice %93 {offsets = [4, 0], sizes = [4, 384], strides = [1, 1]} : vector<8x384xf32> to vector<4x384xf32>
    %c0_32 = arith.constant 0 : index
    %c384_33 = arith.constant 384 : index
    %97 = vector.load %arg4[%c0_32, %c384_33] : memref<4x768xf32, #tpu.memory_space<vmem>>, vector<4x384xf32>
    tpu.vector_store %arg4[%c0_32, %c384_33], %96 {strides = array<i32>} : memref<4x768xf32, #tpu.memory_space<vmem>>, vector<4x384xf32>,
    return
  }
  func.func @transform_0(%arg0: i32) -> (i32, i32) {
    %c0_i32 = arith.constant 0 : i32
    %c0_i32_0 = arith.constant 0 : i32
    %c0_i32_1 = arith.constant 0 : i32
    return %c0_i32, %c0_i32_0 : i32, i32
  }
  func.func @transform_1(%arg0: i32) -> (i32, i32) {
    %c0_i32 = arith.constant 0 : i32
    %c0_i32_0 = arith.constant 0 : i32
    %c0_i32_1 = arith.constant 0 : i32
    return %c0_i32, %c0_i32_0 : i32, i32
  }
  func.func @transform_2(%arg0: i32) -> (i32, i32) {
    %c0_i32 = arith.constant 0 : i32
    %c0_i32_0 = arith.constant 0 : i32
    return %c0_i32, %arg0 : i32, i32
  }
  func.func @transform_3(%arg0: i32) -> (i32, i32) {
    %c0_i32 = arith.constant 0 : i32
    %c0_i32_0 = arith.constant 0 : i32
    return %c0_i32, %arg0 : i32, i32
  }
}

</mosaic_0001>

<llo_original>
// kernel: tpu_custom_call.1
$region0: #{tpu_custom_call.1}
  #allocation0 [shape = 'u32[]', space=smem, size = 0x4, offset = 0x4, fixed_abs, tag = 'smem constant byte address 0x4 - core index']
  #allocation1 [shape = 'u32[144,128]{1,0:T(1,128)}', space=vmem, size = 0x12000, scoped, tag = 'internal scratch']
  %s0 = inlined_call_operand.vmem [shape: f32[8,8], index: 0, kind: input, shape index: {}]
  %s1 = inlined_call_operand.vmem [shape: f32[8,1], index: 1, kind: input, shape index: {}]
  %s2 = inlined_call_operand.hbm [shape: f32[4,768], index: 2, kind: input, shape index: {}]
  %s3 = inlined_call_operand.hbm [shape: f32[4,768], index: 3, kind: output, shape index: {}]
  %s4 = sld [smem:[#allocation0]]
  $region26: #{tpu_custom_call.1} parent=0
    _
  %s6 = ssub.s32 1, %s4
  %s7 = scalar_select 0, %s6, %s4
  $region1: #{tpu_custom_call.1} parent=0
    #allocation2 [shape = 'u8[12288]{0}', space=vmem, size = 0x3000, scoped, tag = 'input window, operand 2, single buffered']
    #allocation3 [shape = 's32[1]{0}', space=sflag, size = 0x4, scoped, tag = 'scoped memory for tpu_custom_call.1']
    #allocation4 [shape = 's32[1]{0}', space=sflag, size = 0x4, scoped, tag = 'scoped memory for tpu_custom_call.1']
    #allocation5 [shape = 'u8[12288]{0}', space=vmem, size = 0x3000, scoped, tag = 'output window, operand 0, single buffered']
    %8 = vsyncpa [#allocation3], 0
    %9 = vsyncpa [#allocation4], 0
    // Predicated region
    $region2: #{tpu_custom_call.1} parent=1 // pred_check
      _
    $region3: #{tpu_custom_call.1} parent=1 // pred_check_branch
      %11 = sbr.rel (0) target = $region5
    $region4: #{tpu_custom_call.1} parent=1 // pred_region
      _
    $region5: #{tpu_custom_call.1} parent=1 // pred_fallthru
      _
    // Predicated region
    $region6: #{tpu_custom_call.1} parent=1 // pred_check
      _
    $region7: #{tpu_custom_call.1} parent=1 // pred_check_branch
      %13 = sbr.rel (0) target = $region9
    $region8: #{tpu_custom_call.1} parent=1 // pred_region
      _
    $region9: #{tpu_custom_call.1} parent=1 // pred_fallthru
      _
    // Predicated region
    $region10: #{tpu_custom_call.1} parent=1 // pred_check
      _
    $region11: #{tpu_custom_call.1} parent=1 // pred_check_branch
      %15 = sbr.rel (0) target = $region13
    $region12: #{tpu_custom_call.1} parent=1 // pred_region
      %s17 = ssub.s32 384, 384
      %18 = vsyncadd [#allocation3], %s17
      %s20 = sshll.u32 [#allocation2], 4
      %s21 = int_to_ptr.vmem [resolvable:$true] %s20
      %23 = dma.hbm_to_vmem [thread:$0]  %s2, 384, %s21, [#allocation3]
    $region13: #{tpu_custom_call.1} parent=1 // pred_fallthru
      _
    // Predicated region
    $region14: #{tpu_custom_call.1} parent=1 // pred_check
      _
    $region15: #{tpu_custom_call.1} parent=1 // pred_check_branch
      %25 = sbr.rel (0) target = $region17
    $region16: #{tpu_custom_call.1} parent=1 // pred_region
      %26 = dma.done [#allocation3], 384
    $region17: #{tpu_custom_call.1} parent=1 // pred_fallthru
      _
    %v27 = vld [vmem:[%s0] sm:$0xff]
    %v28 = vld [vmem:[%s1] sm:$0xff]
    %v29 = vld [vmem:[#allocation2] ss:$4 sm:$0x7]
    %31 = vset.pattern.permute.xlu0 0
    %32 = vperm.xlu0 %31, %v27
    %v33 = vpop.permute.xlu0 %32
    %v36 = vlaneseq
    %v37 = vshrl.u32 %v36, 7
    %v38 = vsub.s32 0, %v37
    %v39 = vrot.slane %v29, %v38
    %v40 = vlaneseq
    %v41 = vshrl.u32 %v40, 7
    %v42 = vsub.s32 1, %v41
    %v43 = vrot.slane %v29, %v42
    %v44 = vlaneseq
    %v45 = vshrl.u32 %v44, 7
    %v46 = vsub.s32 2, %v45
    %v47 = vrot.slane %v29, %v46
    %v51 = vmul.f32 %v33, %v39
    %v52 = vmul.f32 %v33, %v43
    %v53 = vmul.f32 %v33, %v47
    %55 = vset.pattern.permute.xlu0 0
    %56 = vperm.xlu0 %55, %v28
    %v57 = vpop.permute.xlu0 %56
    %v59 = vadd.f32 %v57, %v51
    %v60 = vadd.f32 %v57, %v52
    %v61 = vadd.f32 %v57, %v53
    %s62 = scalar_lea.vmem [#allocation2], 1
    %v63 = vld [vmem:[%s62] ss:$4 sm:$0x7]
    %64 = vset.pattern.permute.xlu0 1
    %65 = vperm.xlu0 %64, %v27
    %v66 = vpop.permute.xlu0 %65
    %v69 = vlaneseq
    %v70 = vshrl.u32 %v69, 7
    %v71 = vsub.s32 0, %v70
    %v72 = vrot.slane %v63, %v71
    %v73 = vlaneseq
    %v74 = vshrl.u32 %v73, 7
    %v75 = vsub.s32 1, %v74
    %v76 = vrot.slane %v63, %v75
    %v77 = vlaneseq
    %v78 = vshrl.u32 %v77, 7
    %v79 = vsub.s32 2, %v78
    %v80 = vrot.slane %v63, %v79
    %v84 = vmul.f32 %v66, %v72
    %v85 = vmul.f32 %v66, %v76
    %v86 = vmul.f32 %v66, %v80
    %v87 = vadd.f32 %v59, %v84
    %v88 = vadd.f32 %v60, %v85
    %v89 = vadd.f32 %v61, %v86
    %s90 = scalar_lea.vmem [#allocation2], 2
    %v91 = vld [vmem:[%s90] ss:$4 sm:$0x7]
    %92 = vset.pattern.permute.xlu0 2
    %93 = vperm.xlu0 %92, %v27
    %v94 = vpop.permute.xlu0 %93
    %v97 = vlaneseq
    %v98 = vshrl.u32 %v97, 7
    %v99 = vsub.s32 0, %v98
    %v100 = vrot.slane %v91, %v99
    %v101 = vlaneseq
    %v102 = vshrl.u32 %v101, 7
    %v103 = vsub.s32 1, %v102
    %v104 = vrot.slane %v91, %v103
    %v105 = vlaneseq
    %v106 = vshrl.u32 %v105, 7
    %v107 = vsub.s32 2, %v106
    %v108 = vrot.slane %v91, %v107
    %v112 = vmul.f32 %v94, %v100
    %v113 = vmul.f32 %v94, %v104
    %v114 = vmul.f32 %v94, %v108
    %v115 = vadd.f32 %v87, %v112
    %v116 = vadd.f32 %v88, %v113
    %v117 = vadd.f32 %v89, %v114
    %s118 = scalar_lea.vmem [#allocation2], 3
    %v119 = vld [vmem:[%s118] ss:$4 sm:$0x7]
    %120 = vset.pattern.permute.xlu0 3
    %121 = vperm.xlu0 %120, %v27
    %v122 = vpop.permute.xlu0 %121
    %v125 = vlaneseq
    %v126 = vshrl.u32 %v125, 7
    %v127 = vsub.s32 0, %v126
    %v128 = vrot.slane %v119, %v127
    %v129 = vlaneseq
    %v130 = vshrl.u32 %v129, 7
    %v131 = vsub.s32 1, %v130
    %v132 = vrot.slane %v119, %v131
    %v133 = vlaneseq
    %v134 = vshrl.u32 %v133, 7
    %v135 = vsub.s32 2, %v134
    %v136 = vrot.slane %v119, %v135
    %v140 = vmul.f32 %v122, %v128
    %v141 = vmul.f32 %v122, %v132
    %v142 = vmul.f32 %v122, %v136
    %v143 = vadd.f32 %v115, %v140
    %v144 = vadd.f32 %v116, %v141
    %v145 = vadd.f32 %v117, %v142
    %s146 = scalar_lea.vmem [#allocation2], 12
    %v147 = vld [vmem:[%s146] ss:$4 sm:$0x7]
    %148 = vset.pattern.permute.xlu0 4
    %149 = vperm.xlu0 %148, %v27
    %v150 = vpop.permute.xlu0 %149
    %v153 = vlaneseq
    %v154 = vshrl.u32 %v153, 7
    %v155 = vsub.s32 0, %v154
    %v156 = vrot.slane %v147, %v155
    %v157 = vlaneseq
    %v158 = vshrl.u32 %v157, 7
    %v159 = vsub.s32 1, %v158
    %v160 = vrot.slane %v147, %v159
    %v161 = vlaneseq
    %v162 = vshrl.u32 %v161, 7
    %v163 = vsub.s32 2, %v162
    %v164 = vrot.slane %v147, %v163
    %v168 = vmul.f32 %v150, %v156
    %v169 = vmul.f32 %v150, %v160
    %v170 = vmul.f32 %v150, %v164
    %v171 = vadd.f32 %v143, %v168
    %v172 = vadd.f32 %v144, %v169
    %v173 = vadd.f32 %v145, %v170
    %s174 = scalar_lea.vmem [#allocation2], 13
    %v175 = vld [vmem:[%s174] ss:$4 sm:$0x7]
    %176 = vset.pattern.permute.xlu0 5
    %177 = vperm.xlu0 %176, %v27
    %v178 = vpop.permute.xlu0 %177
    %v181 = vlaneseq
    %v182 = vshrl.u32 %v181, 7
    %v183 = vsub.s32 0, %v182
    %v184 = vrot.slane %v175, %v183
    %v185 = vlaneseq
    %v186 = vshrl.u32 %v185, 7
    %v187 = vsub.s32 1, %v186
    %v188 = vrot.slane %v175, %v187
    %v189 = vlaneseq
    %v190 = vshrl.u32 %v189, 7
    %v191 = vsub.s32 2, %v190
    %v192 = vrot.slane %v175, %v191
    %v196 = vmul.f32 %v178, %v184
    %v197 = vmul.f32 %v178, %v188
    %v198 = vmul.f32 %v178, %v192
    %v199 = vadd.f32 %v171, %v196
    %v200 = vadd.f32 %v172, %v197
    %v201 = vadd.f32 %v173, %v198
    %s202 = scalar_lea.vmem [#allocation2], 14
    %v203 = vld [vmem:[%s202] ss:$4 sm:$0x7]
    %204 = vset.pattern.permute.xlu0 6
    %205 = vperm.xlu0 %204, %v27
    %v206 = vpop.permute.xlu0 %205
    %v209 = vlaneseq
    %v210 = vshrl.u32 %v209, 7
    %v211 = vsub.s32 0, %v210
    %v212 = vrot.slane %v203, %v211
    %v213 = vlaneseq
    %v214 = vshrl.u32 %v213, 7
    %v215 = vsub.s32 1, %v214
    %v216 = vrot.slane %v203, %v215
    %v217 = vlaneseq
    %v218 = vshrl.u32 %v217, 7
    %v219 = vsub.s32 2, %v218
    %v220 = vrot.slane %v203, %v219
    %v224 = vmul.f32 %v206, %v212
    %v225 = vmul.f32 %v206, %v216
    %v226 = vmul.f32 %v206, %v220
    %v227 = vadd.f32 %v199, %v224
    %v228 = vadd.f32 %v200, %v225
    %v229 = vadd.f32 %v201, %v226
    %s230 = scalar_lea.vmem [#allocation2], 15
    %v231 = vld [vmem:[%s230] ss:$4 sm:$0x7]
    %232 = vset.pattern.permute.xlu0 7
    %233 = vperm.xlu0 %232, %v27
    %v234 = vpop.permute.xlu0 %233
    %v237 = vlaneseq
    %v238 = vshrl.u32 %v237, 7
    %v239 = vsub.s32 0, %v238
    %v240 = vrot.slane %v231, %v239
    %v241 = vlaneseq
    %v242 = vshrl.u32 %v241, 7
    %v243 = vsub.s32 1, %v242
    %v244 = vrot.slane %v231, %v243
    %v245 = vlaneseq
    %v246 = vshrl.u32 %v245, 7
    %v247 = vsub.s32 2, %v246
    %v248 = vrot.slane %v231, %v247
    %v252 = vmul.f32 %v234, %v240
    %v253 = vmul.f32 %v234, %v244
    %v254 = vmul.f32 %v234, %v248
    %v255 = vadd.f32 %v227, %v252
    %v256 = vadd.f32 %v228, %v253
    %v257 = vadd.f32 %v229, %v254
    %vm258 = vcmp.ge.f32.partialorder %v255, 0.0
    %vm259 = vcmp.ge.f32.partialorder %v256, 0.0
    %vm260 = vcmp.ge.f32.partialorder %v257, 0.0
    %v261 = vsel %vm258, 1.0, -1.0
    %v262 = vsel %vm259, 1.0, -1.0
    %v263 = vsel %vm260, 1.0, -1.0
    %v264 = vand.u32 2147483647, %v255
    %v265 = vand.u32 2147483647, %v256
    %v266 = vand.u32 2147483647, %v257
    %v267 = vmul.f32 %v264, 0.3275911
    %v268 = vmul.f32 %v265, 0.3275911
    %v269 = vmul.f32 %v266, 0.3275911
    %v270 = vadd.f32 %v267, 1.0
    %v271 = vadd.f32 %v268, 1.0
    %v272 = vadd.f32 %v269, 1.0
    %v273 = vrcp.pop %v270
    %v274 = vrcp.pop %v271
    %v275 = vrcp.pop %v272
    %v276 = vmul.f32 %v270, %v273
    %v277 = vmul.f32 %v271, %v274
    %v278 = vmul.f32 %v272, %v275
    %v279 = vsub.f32 2.0, %v276
    %v280 = vsub.f32 2.0, %v277
    %v281 = vsub.f32 2.0, %v278
    %v282 = vmul.f32 %v273, %v279
    %v283 = vmul.f32 %v274, %v280
    %v284 = vmul.f32 %v275, %v281
    %v285 = vmul.f32 %v282, 1.0614054
    %v286 = vmul.f32 %v283, 1.0614054
    %v287 = vmul.f32 %v284, 1.0614054
    %v288 = vadd.f32 %v285, -1.4531521
    %v289 = vadd.f32 %v286, -1.4531521
    %v290 = vadd.f32 %v287, -1.4531521
    %v291 = vmul.f32 %v288, %v282
    %v292 = vmul.f32 %v289, %v283
    %v293 = vmul.f32 %v290, %v284
    %v294 = vadd.f32 %v291, 1.4214138
    %v295 = vadd.f32 %v292, 1.4214138
    %v296 = vadd.f32 %v293, 1.4214138
    %v297 = vmul.f32 %v294, %v282
    %v298 = vmul.f32 %v295, %v283
    %v299 = vmul.f32 %v296, %v284
    %v300 = vadd.f32 %v297, -0.28449672
    %v301 = vadd.f32 %v298, -0.28449672
    %v302 = vadd.f32 %v299, -0.28449672
    %v303 = vmul.f32 %v300, %v282
    %v304 = vmul.f32 %v301, %v283
    %v305 = vmul.f32 %v302, %v284
    %v306 = vadd.f32 %v303, 0.2548296
    %v307 = vadd.f32 %v304, 0.2548296
    %v308 = vadd.f32 %v305, 0.2548296
    %v309 = vmul.f32 %v306, %v282
    %v310 = vmul.f32 %v307, %v283
    %v311 = vmul.f32 %v308, %v284
    %v312 = vsub.f32 0.0, %v264
    %v313 = vsub.f32 0.0, %v265
    %v314 = vsub.f32 0.0, %v266
    %v315 = vmul.f32 %v312, %v264
    %v316 = vmul.f32 %v313, %v265
    %v317 = vmul.f32 %v314, %v266
    %v318 = vmul.f32 %v315, 1.442695
    %v319 = vpow.pop %v318
    %v320 = vmul.f32 %v316, 1.442695
    %v321 = vpow.pop %v320
    %v322 = vmul.f32 %v317, 1.442695
    %v323 = vpow.pop %v322
    %v324 = vmul.f32 %v309, %v319
    %v325 = vmul.f32 %v310, %v321
    %v326 = vmul.f32 %v311, %v323
    %v327 = vsub.f32 1.0, %v324
    %v328 = vsub.f32 1.0, %v325
    %v329 = vsub.f32 1.0, %v326
    %v330 = vmul.f32 %v261, %v327
    %v331 = vmul.f32 %v262, %v328
    %v332 = vmul.f32 %v263, %v329
    %v333 = vmul.f32 %v330, 0.5
    %v334 = vmul.f32 %v331, 0.5
    %v335 = vmul.f32 %v332, 0.5
    %v336 = vadd.f32 %v333, 0.5
    %v337 = vadd.f32 %v334, 0.5
    %v338 = vadd.f32 %v335, 0.5
    %v339 = vadd.f32 %v336, 1e-09
    %v340 = vadd.f32 %v337, 1e-09
    %v341 = vadd.f32 %v338, 1e-09
    %v345 = vcombine.low %v339, %v340
    %347 = vst [vmem:[#allocation5] sm:$0xff] %v345
    %348 = vst [vmem:[#allocation5 + $0x8] sm:$0xf] %v341
    %v349 = vcombine.high %v339, %v340
    %v350 = vcombine.high %v341, %v341
    %353 = vst [vmem:[#allocation5 + $0xc] sm:$0xff] %v349
    %354 = vst [vmem:[#allocation5 + $0x14] sm:$0xf] %v350
    // Predicated region
    $region18: #{tpu_custom_call.1} parent=1 // pred_check
      _
    $region19: #{tpu_custom_call.1} parent=1 // pred_check_branch
      %356 = sbr.rel (0) target = $region21
    $region20: #{tpu_custom_call.1} parent=1 // pred_region
      %s358 = ssub.s32 384, 384
      %359 = vsyncadd [#allocation4], %s358
      %s361 = sshll.u32 [#allocation5], 4
      %s362 = int_to_ptr.vmem [resolvable:$true] %s361
      %364 = dma.vmem_to_hbm [thread:$0]  %s362, 384, %s3, [#allocation4]
    $region21: #{tpu_custom_call.1} parent=1 // pred_fallthru
      _
    // Predicated region
    $region22: #{tpu_custom_call.1} parent=1 // pred_check
      _
    $region23: #{tpu_custom_call.1} parent=1 // pred_check_branch
      %366 = sbr.rel (0) target = $region25
    $region24: #{tpu_custom_call.1} parent=1 // pred_region
      %367 = dma.done [#allocation4], 384
    $region25: #{tpu_custom_call.1} parent=1 // pred_fallthru
      _
    %368 = vsyncpa [#allocation3], 1
    %369 = vsyncpa [#allocation4], 1

</llo_original>
